<compile_context>
chip_gen: v5e
topology: v5e:2x2
jax: 0.10.0
libtpu: 0.0.40
codegen_flags: <defaults>
</compile_context>

<pallas_src>
import functools

import jax
import jax.numpy as jnp
from jax.experimental import pallas as pl
from jax.experimental.pallas import tpu as pltpu


_BLOCK_BUDGET_BYTES = 2 << 20          # ~2 MiB per pipelined block (all generations)
_VMEM_LIMIT_BYTES = 32 * 1024 * 1024   # 4 buffers x 2 MiB + weights << 32 MiB


# ---------------------------------------------------------------------------
# Kernels
# ---------------------------------------------------------------------------
def _fused_kernel(x_ref, w1t_ref, w2_ref, o_ref, *, n_valid):
    """Scores + softmax(over N) + re-weight for one (Bt, Np, C) block."""
    bt, n, c = x_ref.shape
    # C->H projection on the MXU in bf16 (w1t pre-cast in the wrapper), f32 acc.
    # Np % 8 == 0 is guaranteed by the wrapper, so the reshape is a layout no-op.
    x2 = x_ref[...].reshape(bt * n, c).astype(jnp.bfloat16)
    h = jnp.tanh(jnp.dot(x2, w1t_ref[...], preferred_element_type=jnp.float32))
    # H->1 projection on the VPU: broadcast-mul + lane reduce (1-wide MXU matmul
    # would waste the systolic array).
    s = jnp.sum(h * w2_ref[...], axis=-1, keepdims=True)            # (Bt*Np, 1)
    s = s.reshape(bt, n, 1)
    if n_valid < n:
        # Padded instances must not contribute to the softmax.
        idx = jax.lax.broadcasted_iota(jnp.int32, (n, 1), 0).reshape(1, n, 1)
        s = jnp.where(idx < n_valid, s, -jnp.inf)
    m = jnp.max(s, axis=1, keepdims=True)                            # (Bt, 1, 1)
    p = jnp.exp(s - m)                                               # (Bt, Np, 1)
    att = p / jnp.sum(p, axis=1, keepdims=True)                      # exact divide
    # Re-read x from the (already resident) VMEM block for the re-weight instead
    # of keeping the full f32 block live across the matmul/softmax.
    o_ref[...] = (x_ref[...] * att).astype(o_ref.dtype)


def _scores_kernel(x_ref, w1t_ref, w2_ref, s_ref):
    """Raw (pre-softmax) attention scores for one (1, Nt, C) block."""
    _, nt, c = x_ref.shape
    x2 = x_ref[...].reshape(nt, c).astype(jnp.bfloat16)
    h = jnp.tanh(jnp.dot(x2, w1t_ref[...], preferred_element_type=jnp.float32))
    s = jnp.sum(h * w2_ref[...], axis=-1, keepdims=True)             # (Nt, 1)
    s_ref[...] = s.reshape(1, nt, 1).astype(s_ref.dtype)


def _reweight_kernel(x_ref, att_ref, o_ref):
    o_ref[...] = (x_ref[...] * att_ref[...]).astype(o_ref.dtype)


# ---------------------------------------------------------------------------
# Tiling heuristics
# ---------------------------------------------------------------------------
def _choose_batch_tile(B, per_batch_bytes, budget_bytes):
    """Largest batch tile that fits the budget, preferring >= 8 grid steps
    (>= 4 per v7x TensorCore) then >= 2, so the pipeline actually overlaps."""
    limit = budget_bytes // max(1, per_batch_bytes)
    if limit < 1:
        return None  # a single batch element does not fit -> N-tiled fallback
    divs = [d for d in range(1, B + 1) if B % d == 0 and d <= limit]
    for min_steps in (8, 2, 1):
        cand = [d for d in divs if B // d >= min_steps]
        if cand:
            return max(cand)
    return 1


def _choose_instance_tile(n_pad, C, itemsize, budget_bytes):
    """Largest multiple-of-8 divisor of n_pad whose (1, Nt, C) block fits."""
    limit = max(1, budget_bytes // max(1, C * itemsize))
    divs = [d for d in range(8, n_pad + 1, 8) if n_pad % d == 0 and d <= limit]
    return max(divs) if divs else 8


# ---------------------------------------------------------------------------
# Wrapper
# ---------------------------------------------------------------------------
def instance_attention2(x, w1, w2, *, block_budget_bytes=_BLOCK_BUDGET_BYTES):
    """Forward pass of InstanceAttention2.

    x : (B, N, C) float32
    w1: (H, C)  == torch attn[0].weight  (Linear(C->H, bias=False))
    w2: (1, H)  == torch attn[2].weight  (Linear(H->1, bias=False))
    returns (B, N, C)
    """
    B, N, C = x.shape
    H = w1.shape[0]
    dtype = x.dtype
    itemsize = jnp.dtype(dtype).itemsize

    w1t = w1.T.astype(jnp.bfloat16)          # (C, H) bf16 MXU operand
    w2r = w2.reshape(1, H).astype(jnp.float32)

    # Pad N to a multiple of 8 so in-kernel leading-dim reshapes are layout no-ops.
    n_pad = ((N + 7) // 8) * 8
    xp = x if n_pad == N else jnp.pad(x, ((0, 0), (0, n_pad - N), (0, 0)))

    per_batch_bytes = n_pad * C * itemsize
    Bt = _choose_batch_tile(B, per_batch_bytes, block_budget_bytes)

    compiler_params_1d = pltpu.CompilerParams(
        dimension_semantics=("parallel",), vmem_limit_bytes=_VMEM_LIMIT_BYTES)
    compiler_params_2d = pltpu.CompilerParams(
        dimension_semantics=("parallel", "parallel"),
        vmem_limit_bytes=_VMEM_LIMIT_BYTES)

    if Bt is not None:
        # ---------- fast path: one fused kernel, batch-tiled grid ----------
        grid = (B // Bt,)
        cost = pl.CostEstimate(
            flops=int(2 * B * n_pad * H * (C + 1)),
            transcendentals=int(B * n_pad * (H + 1)),
            bytes_accessed=int(itemsize * 2 * B * n_pad * C + 2 * C * H + 4 * H),
        )
        out = pl.pallas_call(
            functools.partial(_fused_kernel, n_valid=N),
            out_shape=jax.ShapeDtypeStruct((B, n_pad, C), dtype),
            grid_spec=pltpu.PrefetchScalarGridSpec(
                num_scalar_prefetch=0,
                grid=grid,
                in_specs=[
                    pl.BlockSpec((Bt, n_pad, C), lambda b: (b, 0, 0)),
                    pl.BlockSpec((C, H), lambda b: (0, 0)),
                    pl.BlockSpec((1, H), lambda b: (0, 0)),
                ],
                out_specs=pl.BlockSpec((Bt, n_pad, C), lambda b: (b, 0, 0)),
            ),
            compiler_params=compiler_params_1d,
            cost_estimate=cost,
        )(xp, w1t, w2r)
    else:
        # ---------- fallback: N-tiled two-pass path (large N*C or B=1) ----------
        Nt = _choose_instance_tile(n_pad, C, itemsize, block_budget_bytes)
        grid = (B, n_pad // Nt)

        scores = pl.pallas_call(
            _scores_kernel,
            out_shape=jax.ShapeDtypeStruct((B, n_pad, 1), jnp.float32),
            grid_spec=pltpu.PrefetchScalarGridSpec(
                num_scalar_prefetch=0,
                grid=grid,
                in_specs=[
                    pl.BlockSpec((1, Nt, C), lambda b, ni: (b, ni, 0)),
                    pl.BlockSpec((C, H), lambda b, ni: (0, 0)),
                    pl.BlockSpec((1, H), lambda b, ni: (0, 0)),
                ],
                out_specs=pl.BlockSpec((1, Nt, 1), lambda b, ni: (b, ni, 0)),
            ),
            compiler_params=compiler_params_2d,
        )(xp, w1t, w2r)

        if n_pad != N:
            idx = jnp.arange(n_pad).reshape(1, n_pad, 1)
            scores = jnp.where(idx < N, scores, -jnp.inf)
        att = jax.nn.softmax(scores, axis=1)          # (B, n_pad, 1) - tiny, in JAX

        out = pl.pallas_call(
            _reweight_kernel,
            out_shape=jax.ShapeDtypeStruct((B, n_pad, C), dtype),
            grid_spec=pltpu.PrefetchScalarGridSpec(
                num_scalar_prefetch=0,
                grid=grid,
                in_specs=[
                    pl.BlockSpec((1, Nt, C), lambda b, ni: (b, ni, 0)),
                    pl.BlockSpec((1, Nt, 1), lambda b, ni: (b, ni, 0)),
                ],
                out_specs=pl.BlockSpec((1, Nt, C), lambda b, ni: (b, ni, 0)),
            ),
            compiler_params=compiler_params_2d,
        )(xp, att)

    if n_pad != N:
        out = out[:, :N, :]
    return out


# ---------------------------------------------------------------------------
# Reference + tests
# ---------------------------------------------------------------------------
def _reference(x, w1, w2):
    B, N, C = x.shape
    att = jnp.tanh(x.reshape(-1, C) @ w1.T) @ w2.T            # (B*N, 1)
    att = jax.nn.softmax(att.reshape(B, N, 1), axis=1)
    return x * att


def _run_case(key, B, N, C, reduction, **kwargs):
    H = max(1, C // reduction)
    kx, k1, k2 = jax.random.split(key, 3)
    x = jax.random.normal(kx, (B, N, C), dtype=jnp.float32)
    # torch Linear default init: U(-1/sqrt(fan_in), 1/sqrt(fan_in))
    w1 = jax.random.uniform(k1, (H, C), minval=-1.0 / (C ** 0.5),
                            maxval=1.0 / (C ** 0.5), dtype=jnp.float32)
    w2 = jax.random.uniform(k2, (1, H), minval=-1.0 / (H ** 0.5),
                            maxval=1.0 / (H ** 0.5), dtype=jnp.float32)

    out = jax.block_until_ready(instance_attention2(x, w1, w2, **kwargs))
    ref = _reference(x, w1, w2)
    assert out.shape == (B, N, C)
    # bf16 operands in the score matmul -> ~1e-3 relative error on the scores.
    assert jnp.allclose(out, ref, atol=2e-2, rtol=2e-2), \
        float(jnp.max(jnp.abs(out - ref)))


if __name__ == "__main__":
    key = jax.random.PRNGKey(0)
    k1, k2, k3, k4 = jax.random.split(key, 4)
    # Module-scale smoke test (Bt=1, grid=(2,)).
    _run_case(k1, B=2, N=8, C=32, reduction=16)
    # Lane-dense C, grid=(8,) so both v7x TensorCores get >= 4 pipelined steps.
    _run_case(k2, B=8, N=16, C=128, reduction=16)
    # N not a multiple of 8: exercises padding + masked softmax in the fast path.
    _run_case(k3, B=2, N=5, C=32, reduction=16)
    # Force the two-pass N-tiled fallback path with a tiny VMEM budget.
    _run_case(k4, B=1, N=64, C=128, reduction=16, block_budget_bytes=16 * 1024)
    print("KERNEL_OK")
</pallas_src>

<mosaic_0001>
module attributes {stable_mosaic.version = 11 : i64} {
  func.func @_fused_kernel(%arg0: i32, %arg1: memref<1x8x32xf32, #tpu.memory_space<vmem>>, %arg2: memref<32x2xbf16, #tpu.memory_space<vmem>>, %arg3: memref<1x2xf32, #tpu.memory_space<vmem>>, %arg4: memref<1x8x32xf32, #tpu.memory_space<vmem>>) attributes {dimension_semantics = [#tpu.dimension_semantics<parallel>], iteration_bounds = array<i64: 2>, scalar_prefetch = 0 : i64, scratch_operands = 0 : i64, tpu.core_type = #tpu.core_type<tc>, window_params = [{transform_indices = @transform_0, window_bounds = array<i64: 1, 8, 32>}, {pipeline_mode = #tpu.pipeline_mode<synchronous>, transform_indices = @transform_1, window_bounds = array<i64: 32, 2>}, {pipeline_mode = #tpu.pipeline_mode<synchronous>, transform_indices = @transform_2, window_bounds = array<i64: 1, 2>}, {transform_indices = @transform_3, window_bounds = array<i64: 1, 8, 32>}]} {
    %c0 = arith.constant 0 : index
    %c0_0 = arith.constant 0 : index
    %c0_1 = arith.constant 0 : index
    %0 = vector.load %arg1[%c0, %c0_0, %c0_1] : memref<1x8x32xf32, #tpu.memory_space<vmem>>, vector<1x8x32xf32>
    %1 = vector.shape_cast %0 : vector<1x8x32xf32> to vector<8x32xf32>
    %2 = arith.truncf %1 : vector<8x32xf32> to vector<8x32xbf16>
    %c0_2 = arith.constant 0 : index
    %c0_3 = arith.constant 0 : index
    %3 = vector.load %arg2[%c0_2, %c0_3] : memref<32x2xbf16, #tpu.memory_space<vmem>>, vector<32x2xbf16>
    %cst = arith.constant dense<0.000000e+00> : vector<8x2xf32>
    %4 = tpu.matmul %2, %3, %cst {dimension_numbers = #tpu.dot_dimension_numbers<[1], [0], [0], [1], [0, 0, 1, 1], [], []>} : vector<8x32xbf16>, vector<32x2xbf16>, vector<8x2xf32> -> vector<8x2xf32>
    %5 = math.tanh %4 : vector<8x2xf32>
    %c0_4 = arith.constant 0 : index
    %c0_5 = arith.constant 0 : index
    %6 = vector.load %arg3[%c0_4, %c0_5] : memref<1x2xf32, #tpu.memory_space<vmem>>, vector<1x2xf32>
    %7 = vector.broadcast %6 : vector<1x2xf32> to vector<8x2xf32>
    %8 = arith.mulf %5, %7 : vector<8x2xf32>
    %cst_6 = arith.constant dense<0.000000e+00> : vector<8xf32>
    %9 = vector.multi_reduction <add>, %8, %cst_6 [1] : vector<8x2xf32> to vector<8xf32>
    %10 = vector.shape_cast %9 : vector<8xf32> to vector<8x1xf32>
    %11 = vector.shape_cast %10 : vector<8x1xf32> to vector<1x8x1xf32>
    %cst_7 = arith.constant dense<0xFF800000> : vector<1x1xf32>
    %12 = vector.multi_reduction <maximumf>, %11, %cst_7 [1] : vector<1x8x1xf32> to vector<1x1xf32>
    %13 = vector.shape_cast %12 : vector<1x1xf32> to vector<1x1x1xf32>
    %14 = vector.broadcast %13 : vector<1x1x1xf32> to vector<1x8x1xf32>
    %15 = arith.subf %11, %14 : vector<1x8x1xf32>
    %16 = math.exp %15 : vector<1x8x1xf32>
    %cst_8 = arith.constant dense<0.000000e+00> : vector<1x1xf32>
    %17 = vector.multi_reduction <add>, %16, %cst_8 [1] : vector<1x8x1xf32> to vector<1x1xf32>
    %18 = vector.shape_cast %17 : vector<1x1xf32> to vector<1x1x1xf32>
    %19 = vector.broadcast %18 : vector<1x1x1xf32> to vector<1x8x1xf32>
    %20 = arith.divf %16, %19 : vector<1x8x1xf32>
    %c0_9 = arith.constant 0 : index
    %c0_10 = arith.constant 0 : index
    %c0_11 = arith.constant 0 : index
    %21 = vector.load %arg1[%c0_9, %c0_10, %c0_11] : memref<1x8x32xf32, #tpu.memory_space<vmem>>, vector<1x8x32xf32>
    %22 = vector.broadcast %20 : vector<1x8x1xf32> to vector<1x8x32xf32>
    %23 = arith.mulf %21, %22 : vector<1x8x32xf32>
    %c0_12 = arith.constant 0 : index
    %c0_13 = arith.constant 0 : index
    %c0_14 = arith.constant 0 : index
    %24 = vector.load %arg4[%c0_12, %c0_13, %c0_14] : memref<1x8x32xf32, #tpu.memory_space<vmem>>, vector<1x8x32xf32>
    tpu.vector_store %arg4[%c0_12, %c0_13, %c0_14], %23 {strides = array<i32>} : memref<1x8x32xf32, #tpu.memory_space<vmem>>, vector<1x8x32xf32>,
    return
  }
  func.func @transform_0(%arg0: i32) -> (i32, i32, i32) {
    %c0_i32 = arith.constant 0 : i32
    %c0_i32_0 = arith.constant 0 : i32
    %c0_i32_1 = arith.constant 0 : i32
    return %arg0, %c0_i32, %c0_i32_0 : i32, i32, i32
  }
  func.func @transform_1(%arg0: i32) -> (i32, i32) {
    %c0_i32 = arith.constant 0 : i32
    %c0_i32_0 = arith.constant 0 : i32
    %c0_i32_1 = arith.constant 0 : i32
    return %c0_i32, %c0_i32_0 : i32, i32
  }
  func.func @transform_2(%arg0: i32) -> (i32, i32) {
    %c0_i32 = arith.constant 0 : i32
    %c0_i32_0 = arith.constant 0 : i32
    %c0_i32_1 = arith.constant 0 : i32
    return %c0_i32, %c0_i32_0 : i32, i32
  }
  func.func @transform_3(%arg0: i32) -> (i32, i32, i32) {
    %c0_i32 = arith.constant 0 : i32
    %c0_i32_0 = arith.constant 0 : i32
    %c0_i32_1 = arith.constant 0 : i32
    return %arg0, %c0_i32, %c0_i32_0 : i32, i32, i32
  }
}

</mosaic_0001>

<llo_original>
// kernel: tpu_custom_call.1
$region0: #{tpu_custom_call.1}
  #allocation0 [shape = 'u32[]', space=smem, size = 0x4, offset = 0x4, fixed_abs, tag = 'smem constant byte address 0x4 - core index']
  #allocation1 [shape = 'u32[72,128]{1,0:T(1,128)}', space=vmem, size = 0x9000, scoped, tag = 'internal scratch']
  %s0 = inlined_call_operand.vmem [shape: f32[2,8,32], index: 0, kind: input, shape index: {}]
  %s1 = inlined_call_operand.vmem [shape: bf16[32,2], index: 1, kind: input, shape index: {}]
  %s2 = inlined_call_operand.vmem [shape: f32[1,2], index: 2, kind: input, shape index: {}]
  %s3 = inlined_call_operand.hbm [shape: f32[2,8,32], index: 3, kind: output, shape index: {}]
  %s4 = sld [smem:[#allocation0]]
  $region45: #{tpu_custom_call.1} parent=0
    _
  %s6 = ssub.s32 1, %s4
  %s7 = scalar_select 0, %s6, %s4
  $region1: #{tpu_custom_call.1} parent=0
    #allocation2 [shape = 'u8[8192]{0}', space=vmem, size = 0x2000, scoped, tag = 'output window, operand 0']
    #allocation3 [shape = 's32[2]{0}', space=sflag, size = 0x8, scoped, tag = 'scoped memory for tpu_custom_call.1']
    %8 = vsyncpa [#allocation3], 0
    %s9 = scalar_lea.sflag [#allocation3], 1
    %10 = vsyncpa %s9, 0
    loop: start=0, step=1, limit=4
    $region2: #{tpu_custom_call.1} parent=1 // loop_pre_header
      _
    $region3: #{tpu_custom_call.1} parent=1 // loop_header
      %s12 = sphi 0, %s16
      %p13 = scmp.ge.s32.totalorder %s12, 4
      %s22 = sphi 0, %s24
      %s25 = sphi 0, %s22
      %s26 = sphi 0, %s25
      %s42 = sphi 0, %s26
      %s46 = sphi 0, %s46
      %s48 = sphi 0, %s46
      %s49 = sphi 0, %s48
      %s63 = sphi 0, %s49
      %s67 = sphi 0, %s67
      %s69 = sphi 0, %s67
      %s70 = sphi 0, %s69
      %s84 = sphi 0, %s70
      %s90 = sphi 0, %s92
      %s93 = sphi 0, %s90
      %s94 = sphi 0, %s93
      %s110 = sphi 0, %s94
    $region4: #{tpu_custom_call.1} parent=1 // loop_header_branch
      %15 = sbr.rel (%p13) target = $region8
    $region5: #{tpu_custom_call.1} parent=1 // loop_body
      %s17 = ssub.s32 %s12, 1
      %s18 = ssub.s32 %s12, 2
      %s19 = sadd.s32 %s12, 1
      %s20 = ssub.s32 %s12, %s19
      %p21 = scmp.eq.s32.totalorder %s20, 0
      %s23 = sadd.s32 %s22, 1
      %s24 = scalar_select %p21, %s22, %s23
      %p27 = pneg %p21
      %p28 = scmp.eq.s32.totalorder %s12, 1
      %p29 = por %p27, %p28
      %p30 = scmp.ne.s32.totalorder %s22, %s25
      %p31 = scmp.eq.s32.totalorder %s12, 0
      %p32 = por %p30, %p31
      %p33 = scmp.ne.s32.totalorder %s22, %s25
      %p34 = scmp.eq.s32.totalorder %s17, 1
      %p35 = por %p33, %p34
      %p36 = scmp.ne.s32.totalorder %s25, %s26
      %p37 = scmp.eq.s32.totalorder %s17, 0
      %p38 = por %p36, %p37
      %p39 = scmp.ne.s32.totalorder %s25, %s26
      %p40 = scmp.eq.s32.totalorder %s18, 1
      %p41 = por %p39, %p40
      %p43 = scmp.ne.s32.totalorder %s26, %s42
      %p44 = scmp.eq.s32.totalorder %s18, 0
      %p45 = por %p43, %p44
      %s47 = sadd.s32 %s46, 1
      %p50 = scmp.eq.s32.totalorder %s12, 1
      %p51 = scmp.ne.s32.totalorder %s46, %s48
      %p52 = scmp.eq.s32.totalorder %s12, 0
      %p53 = por %p51, %p52
      %p54 = scmp.ne.s32.totalorder %s46, %s48
      %p55 = scmp.eq.s32.totalorder %s17, 1
      %p56 = por %p54, %p55
      %p57 = scmp.ne.s32.totalorder %s48, %s49
      %p58 = scmp.eq.s32.totalorder %s17, 0
      %p59 = por %p57, %p58
      %p60 = scmp.ne.s32.totalorder %s48, %s49
      %p61 = scmp.eq.s32.totalorder %s18, 1
      %p62 = por %p60, %p61
      %p64 = scmp.ne.s32.totalorder %s49, %s63
      %p65 = scmp.eq.s32.totalorder %s18, 0
      %p66 = por %p64, %p65
      %s68 = sadd.s32 %s67, 1
      %p71 = scmp.eq.s32.totalorder %s12, 1
      %p72 = scmp.ne.s32.totalorder %s67, %s69
      %p73 = scmp.eq.s32.totalorder %s12, 0
      %p74 = por %p72, %p73
      %p75 = scmp.ne.s32.totalorder %s67, %s69
      %p76 = scmp.eq.s32.totalorder %s17, 1
      %p77 = por %p75, %p76
      %p78 = scmp.ne.s32.totalorder %s69, %s70
      %p79 = scmp.eq.s32.totalorder %s17, 0
      %p80 = por %p78, %p79
      %p81 = scmp.ne.s32.totalorder %s69, %s70
      %p82 = scmp.eq.s32.totalorder %s18, 1
      %p83 = por %p81, %p82
      %p85 = scmp.ne.s32.totalorder %s70, %s84
      %p86 = scmp.eq.s32.totalorder %s18, 0
      %p87 = por %p85, %p86
      %s88 = ssub.s32 %s12, %s19
      %p89 = scmp.eq.s32.totalorder %s88, 0
      %s91 = sadd.s32 %s90, 1
      %s92 = scalar_select %p89, %s90, %s91
      %p95 = pneg %p89
      %p96 = scmp.eq.s32.totalorder %s12, 1
      %p97 = por %p95, %p96
      %p98 = scmp.ne.s32.totalorder %s90, %s93
      %p99 = scmp.eq.s32.totalorder %s12, 0
      %p100 = por %p98, %p99
      %p101 = scmp.ne.s32.totalorder %s90, %s93
      %p102 = scmp.eq.s32.totalorder %s17, 1
      %p103 = por %p101, %p102
      %p104 = scmp.ne.s32.totalorder %s93, %s94
      %p105 = scmp.eq.s32.totalorder %s17, 0
      %p106 = por %p104, %p105
      %p107 = scmp.ne.s32.totalorder %s93, %s94
      %p108 = scmp.eq.s32.totalorder %s18, 1
      %p109 = por %p107, %p108
      %p111 = scmp.ne.s32.totalorder %s94, %s110
      %p112 = scmp.eq.s32.totalorder %s18, 0
      %p113 = por %p111, %p112
      %p114 = scmp.le.s32.totalorder 1, %s12
      %p115 = scmp.lt.s32.totalorder %s12, 3
      %p116 = pnand %p114, %p115
      %p117 = pneg %p116
      // Predicated region
      $region9: #{tpu_custom_call.1} parent=5 // pred_check
        _
      $region10: #{tpu_custom_call.1} parent=5 // pred_check_branch
        %119 = sbr.rel (%p116) target = $region12
      $region11: #{tpu_custom_call.1} parent=5 // pred_region
        %s120 = ssub.s32 %s12, 1
        // Predicated region
        $region13: #{tpu_custom_call.1} parent=11 // pred_check
          %p121 = pneg %p59
        $region14: #{tpu_custom_call.1} parent=11 // pred_check_branch
          %123 = sbr.rel (%p121) target = $region16
        $region15: #{tpu_custom_call.1} parent=11 // pred_region
          _
        $region16: #{tpu_custom_call.1} parent=11 // pred_fallthru
          _
        // Predicated region
        $region17: #{tpu_custom_call.1} parent=11 // pred_check
          %p124 = pneg %p80
        $region18: #{tpu_custom_call.1} parent=11 // pred_check_branch
          %126 = sbr.rel (%p124) target = $region20
        $region19: #{tpu_custom_call.1} parent=11 // pred_region
          _
        $region20: #{tpu_custom_call.1} parent=11 // pred_fallthru
          _
      $region12: #{tpu_custom_call.1} parent=5 // pred_fallthru
        _
      %p127 = scmp.lt.s32.totalorder %s12, 2
      // Predicated region
      $region21: #{tpu_custom_call.1} parent=5 // pred_check
        %p128 = pneg %p127
      $region22: #{tpu_custom_call.1} parent=5 // pred_check_branch
        %130 = sbr.rel (%p128) target = $region24
      $region23: #{tpu_custom_call.1} parent=5 // pred_region
        // Predicated region
        $region25: #{tpu_custom_call.1} parent=23 // pred_check
          %p131 = pneg %p32
        $region26: #{tpu_custom_call.1} parent=23 // pred_check_branch
          %133 = sbr.rel (%p131) target = $region28
        $region27: #{tpu_custom_call.1} parent=23 // pred_region
          %p134 = scmp.lt.s32.totalorder %s12, 1
          %s135 = scalar_select %p134, %s12, 1
          %s136 = smul.addr %s135, 8
          %s137 = scalar_lea.vmem %s0, %s136
        $region28: #{tpu_custom_call.1} parent=23 // pred_fallthru
          _
      $region24: #{tpu_custom_call.1} parent=5 // pred_fallthru
        _
      %p138 = scmp.le.s32.totalorder 1, %s12
      %p139 = scmp.lt.s32.totalorder %s12, 3
      %p140 = pnand %p138, %p139
      %p141 = pneg %p140
      // Predicated region
      $region29: #{tpu_custom_call.1} parent=5 // pred_check
        _
      $region30: #{tpu_custom_call.1} parent=5 // pred_check_branch
        %143 = sbr.rel (%p140) target = $region32
      $region31: #{tpu_custom_call.1} parent=5 // pred_region
        %s144 = ssub.s32 %s12, 1
        %p145 = scmp.lt.s32.totalorder %s17, 1
        %s146 = scalar_select %p145, %s17, 1
        %s147 = smul.addr %s146, 8
        %s148 = scalar_lea.vmem %s0, %s147
        %p149 = pneg %p38
        %p150 = pneg %p35
        %p151 = pneg %p59
        %p152 = pneg %p56
        %p153 = pneg %p80
        %p154 = pneg %p77
        %p155 = pneg %p106
        %p156 = pneg %p103
        %s157 = sand.u32 %s93, 1
        %s158 = scalar_lea.sflag [#allocation3], %s157
        %s159 = sand.u32 %s93, 1
        %s160 = smul.addr %s159, 8
        %s161 = scalar_lea.vmem [#allocation2], %s160
        %p162 = scmp.lt.s32.totalorder %s17, 1
        %s163 = scalar_select %p162, %s17, 1
        %s164 = smul.addr %s163, 8
        %s165 = scalar_lea.vmem %s0, %s164
        %v167 = vld [vmem:[%s165] sm:$0xff]
        %v168 = vpack.c.bf16 %v167, %v167
        %v169 = vld [vmem:[%s1] sm:$0xf]
        %v170 = vld [vmem:[%s1 + $0x4] sm:$0xf]
        %v171 = vld [vmem:[%s1 + $0x8] sm:$0xf]
        %v172 = vld [vmem:[%s1 + $0xc] sm:$0xf]
        %v177 = vunpack.c.l.b16 %v169
        %v178 = vunpack.c.l.b16 %v170
        %v179 = vunpack.c.l.b16 %v171
        %v180 = vunpack.c.l.b16 %v172
        %v181 = vpack.c.b16 %v178, %v177
        %v182 = vpack.c.b16 %v180, %v179
        %vm185 = vcmask 261120
        %v187 = vsel %vm185, %v168, 0
        %189 = vmatpush.bf16.msra.mxu0 0
        %190 = vmatpush.bf16.msra.mxu0 0
        %191 = vmatpush.bf16.msra.mxu0 0
        %192 = vmatpush.bf16.msra.mxu0 0
        %193 = vmatpush.bf16.msra.mxu0 0
        %194 = vmatpush.bf16.msra.mxu0 0
        %195 = vmatpush.bf16.msra.mxu0 %v182
        %196 = vmatpush.bf16.msra.mxu0 %v181
        %197 = vmatmul.bf16.gmra.mxu0 %v187
        %v198 = vpop.f32.mrf.mxu0
        %v199 = vadd.f32 0.0, %v198
        %v200 = vpop.f32.mrf.mxu0
        %201 = vdwg.mxu0
        %v202 = vtanh.pop %v199
        %v203 = vld [vmem:[%s2] sm:$0x1]
        %v205 = vperm.slane %v203, 0
        %v207 = vmul.f32 %v202, %v205
        %vm208 = vcmask 15360
        %v209 = vsel %vm208, %v207, 0.0
        %210 = vadd.xlane.f32.xlu0 %v209
        %v211 = vpop.xlane.xlu0 %210
        %v212 = vrot.slane %v211, 4
        %v213 = vmax.f32 %v211, %v212
        %v214 = vrot.slane %v213, 2
        %v215 = vmax.f32 %v213, %v214
        %v216 = vrot.slane %v215, 1
        %v217 = vmax.f32 %v215, %v216
        %v218 = vsub.f32 %v211, %v217
        %v219 = vmul.f32 %v218, 1.442695
        %v220 = vpow.pop %v219
        %v221 = vrot.slane %v220, 4
        %v222 = vadd.f32 %v220, %v221
        %v223 = vrot.slane %v222, 2
        %v224 = vadd.f32 %v222, %v223
        %v225 = vrot.slane %v224, 1
        %v226 = vadd.f32 %v224, %v225
        %v227 = vrcp.pop %v226
        %v228 = vmul.f32 %v226, %v227
        %v229 = vsub.f32 1.0, %v228
        %v230 = vmul.f32 %v227, %v229
        %v231 = vadd.f32 %v227, %v230
        %vm232 = vweird.f32 %v226
        %vm233 = vweird.f32 %v227
        %vm234 = vmor %vm232, %vm233
        %v235 = vsel %vm234, %v227, %v231
        %v236 = vand.u32 2147483647, %v226
        %vm237 = vcmp.eq.f32.partialorder %v236, 8.507059e+37
        %v238 = vand.u32 %v226, 2147483648
        %v239 = vor.u32 1.1754944e-38, %v238
        %v240 = vsel %vm237, %v239, %v235
        %v241 = vmul.f32 %v220, %v240
        %v242 = vmul.f32 %v167, %v241
        %243 = vst.msk [vmem:[%s161] sm:$0xff] %vm185, %v242
        %s244 = sand.u32 %s93, 1
        %s245 = scalar_lea.sflag [#allocation3], %s244
        %s246 = sand.u32 %s93, 1
        %s247 = smul.addr %s246, 8
        %s248 = scalar_lea.vmem [#allocation2], %s247
        // Predicated region
        $region33: #{tpu_custom_call.1} parent=31 // pred_check
          %p249 = pneg %p103
        $region34: #{tpu_custom_call.1} parent=31 // pred_check_branch
          %251 = sbr.rel (%p249) target = $region36
        $region35: #{tpu_custom_call.1} parent=31 // pred_region
          %253 = vsyncadd %s245, 0
          %s254 = smul.addr %s17, 8
          %s255 = scalar_lea.hbm %s3, %s254
          %s257 = sshll.u32 %s248, 4
          %s258 = int_to_ptr.vmem [resolvable:$true] %s257
          %s259 = sshll.u32 %s255, 4
          %s260 = int_to_ptr.hbm [resolvable:$true] %s259
          %262 = dma.vmem_to_hbm [thread:$0]  %s258, 128, %s260, %s245
        $region36: #{tpu_custom_call.1} parent=31 // pred_fallthru
          _
      $region32: #{tpu_custom_call.1} parent=5 // pred_fallthru
        _
      %p263 = scmp.le.s32.totalorder 2, %s12
      // Predicated region
      $region37: #{tpu_custom_call.1} parent=5 // pred_check
        %p264 = pneg %p263
      $region38: #{tpu_custom_call.1} parent=5 // pred_check_branch
        %266 = sbr.rel (%p264) target = $region40
      $region39: #{tpu_custom_call.1} parent=5 // pred_region
        %s267 = ssub.s32 %s12, 2
        // Predicated region
        $region41: #{tpu_custom_call.1} parent=39 // pred_check
          %p268 = pneg %p109
        $region42: #{tpu_custom_call.1} parent=39 // pred_check_branch
          %270 = sbr.rel (%p268) target = $region44
        $region43: #{tpu_custom_call.1} parent=39 // pred_region
          %s271 = sand.u32 %s94, 1
          %s272 = scalar_lea.sflag [#allocation3], %s271
          %s273 = sand.u32 %s94, 1
          %s274 = smul.addr %s273, 8
          %s275 = scalar_lea.vmem [#allocation2], %s274
          %277 = dma.done %s272, 128
        $region44: #{tpu_custom_call.1} parent=39 // pred_fallthru
          _
      $region40: #{tpu_custom_call.1} parent=5 // pred_fallthru
        _
    $region6: #{tpu_custom_call.1} parent=1 // loop_footer
      %s16 = sadd.s32 1, %s12
    $region7: #{tpu_custom_call.1} parent=1 // loop_footer_branch
      %11 = sbr.rel target = $region3
    $region8: #{tpu_custom_call.1} parent=1 // loop_exit
      _
    %278 = vsyncpa [#allocation3], 1
    %s279 = scalar_lea.sflag [#allocation3], 1
    %280 = vsyncpa %s279, 1

</llo_original>
